<compile_context>
chip_gen: v7x
topology: tpu7x:2x2x1
jax: 0.10.0
libtpu: 0.0.40
codegen_flags: <defaults>
</compile_context>

<pallas_src>
import functools

import jax
import jax.numpy as jnp
import numpy as np
from jax.experimental import pallas as pl
from jax.experimental.pallas import tpu as pltpu

# Small synthetic stand-ins for the module's EMB_DIM = CELL_DIM = 1000, NUM_LAYERS = 4.
EMB_DIM = 32
CELL_DIM = 32
NUM_LAYERS = 4

LANE = 128        # f32 lane width
SUBLANE = 8       # f32 sublane width
T_CHUNK = 8       # timesteps per grid step (statically unrolled inside the kernel)


def _round_up(x, m):
    return (x + m - 1) // m * m


def _pick_tile(n, candidates):
    for c in candidates:
        if n % c == 0:
            return c
    return n


E_PAD = _round_up(EMB_DIM, LANE)
H_PAD = _round_up(CELL_DIM, LANE)

_VMEM_LIMIT = None


def _vmem_limit():
    """Generation-specific scoped-VMEM budget (v7x: 64 MiB/TC physical -> leave
    headroom; v5e/v6e: 128 MiB physical -> don't leave most of it unused)."""
    global _VMEM_LIMIT
    if _VMEM_LIMIT is None:
        try:
            kind = jax.devices()[0].device_kind.lower()
        except Exception:
            kind = ""
        if "v7" in kind or "tpu7" in kind:
            _VMEM_LIMIT = 48 * 1024 * 1024
        else:
            _VMEM_LIMIT = 96 * 1024 * 1024
    return _VMEM_LIMIT


# ----------------------------------------------------------------------------
# Generic (M,K)@(K,N)+b GEMM: used for the hoisted input projection (X @ W_x)
# and for the final vocab projection (fc).  2-D "parallel" grid, M- and N-tiled,
# lane-dense output tiles.
# ----------------------------------------------------------------------------
def _matmul_bias_kernel(x_ref, w_ref, b_ref, o_ref):
    acc = jnp.dot(x_ref[...].astype(w_ref.dtype), w_ref[...],
                  preferred_element_type=jnp.float32)
    o_ref[...] = acc + b_ref[...]


def matmul_bias(x2d, w, b):
    M, K = x2d.shape
    K2, N = w.shape
    assert K == K2 and M % SUBLANE == 0 and N % LANE == 0
    tm = _pick_tile(M, (512, 256, 128, 64, 32, 16, 8))
    tn = _pick_tile(N, (1024, 512, 256, 128))
    # TODO(synk): tile K with an "arbitrary" accumulator axis if K ever exceeds VMEM.
    return pl.pallas_call(
        _matmul_bias_kernel,
        grid=(M // tm, N // tn),
        in_specs=[
            pl.BlockSpec((tm, K), lambda i, j: (i, 0)),
            pl.BlockSpec((K, tn), lambda i, j: (0, j)),
            pl.BlockSpec((1, tn), lambda i, j: (0, j)),
        ],
        out_specs=pl.BlockSpec((tm, tn), lambda i, j: (i, j)),
        out_shape=jax.ShapeDtypeStruct((M, N), jnp.float32),
        compiler_params=pltpu.CompilerParams(
            dimension_semantics=("parallel", "parallel"),
            vmem_limit_bytes=_vmem_limit()),
    )(x2d, w, b)


# ----------------------------------------------------------------------------
# Single-layer LSTM recurrence over a chunk of timesteps (shared enc/dec).
# Inputs are the PRE-COMPUTED input-projection gates gx = x @ W_x + b.
# Gate order follows torch.nn.LSTM: i, f, g, o.
# ----------------------------------------------------------------------------
def _lstm_layer_kernel(gx_ref, h0_ref, c0_ref, w_hbm, *rest, t_chunk, use_mask):
    """gx_ref: (t_chunk, Bt, 4H) | h0/c0: (Bt, H) | w_hbm: (H, 4H) in HBM
    [len_ref: (Bt,1) i32 if use_mask] | y_ref: (t_chunk, Bt, H)
    h_out/c_out: (Bt, H) resident recurrent state | w_vmem/w_sem: scratch."""
    if use_mask:
        len_ref, y_ref, h_out, c_out, w_vmem, w_sem = rest
    else:
        y_ref, h_out, c_out, w_vmem, w_sem = rest
        len_ref = None

    chunk = pl.program_id(1)

    @pl.when(chunk == 0)
    def _():
        # Single-buffer the grid-invariant recurrent weight: one manual DMA into
        # a persistent VMEM scratch (re-done at chunk 0 of each batch tile so it
        # is also correct when the "parallel" batch axis is split across cores).
        cp = pltpu.make_async_copy(w_hbm, w_vmem, w_sem)
        cp.start()
        cp.wait()
        h_out[...] = h0_ref[...]
        c_out[...] = c0_ref[...]

    B, H = h_out.shape
    lens = len_ref[...] if use_mask else None            # (Bt, 1) int32
    w = w_vmem[...]

    # Carry h/c in registers across the chunk; write resident refs once at end.
    h = h_out[...]
    c = c_out[...]
    for s in range(t_chunk):                              # static unroll (small chunk)
        t = chunk * t_chunk + s
        gates = gx_ref[s] + jnp.dot(h.astype(w.dtype), w,
                                    preferred_element_type=jnp.float32)
        i = jax.nn.sigmoid(gates[:, 0 * H:1 * H])
        f = jax.nn.sigmoid(gates[:, 1 * H:2 * H])
        g = jnp.tanh(gates[:, 2 * H:3 * H])
        o = jax.nn.sigmoid(gates[:, 3 * H:4 * H])
        c_new = f * c + i * g
        h_new = o * jnp.tanh(c_new)
        if use_mask:   # emulate pack_padded_sequence: freeze state past seq end
            m = t < lens
            c_new = jnp.where(m, c_new, c)
            h_new = jnp.where(m, h_new, h)
        h, c = h_new, c_new
        y_ref[s] = h_new
    h_out[...] = h
    c_out[...] = c


def lstm_layer_forward(x_seq, w_x, w_h, b, h0, c0, lengths=None, *, t_chunk=T_CHUNK):
    """Run ONE LSTM layer over a full padded time-major sequence (T, Bp, Din)."""
    T, Bp, Din = x_seq.shape
    H = h0.shape[1]
    G4 = w_x.shape[1]                      # 4 * H_PAD
    assert T % t_chunk == 0 and Bp % SUBLANE == 0
    use_mask = lengths is not None

    # 1) Hoisted input projection over the whole sequence (big parallel GEMM).
    gx = matmul_bias(x_seq.reshape(T * Bp, Din), w_x, b).reshape(T, Bp, G4)

    # 2) Sequential recurrence, batch-tiled ("parallel") x time-chunked ("arbitrary").
    bt = _pick_tile(Bp, (64, 32, 16, 8))

    in_specs = [
        pl.BlockSpec((t_chunk, bt, G4), lambda bi, c: (c, bi, 0)),   # gx chunk
        pl.BlockSpec((bt, H), lambda bi, c: (bi, 0)),                # h0
        pl.BlockSpec((bt, H), lambda bi, c: (bi, 0)),                # c0
        pl.BlockSpec(memory_space=pl.ANY),                           # W_h stays in HBM
    ]
    args = [gx, h0, c0, w_h]
    if use_mask:
        in_specs.append(pl.BlockSpec((bt, 1), lambda bi, c: (bi, 0)))  # lengths
        args.append(lengths)

    y, h_n, c_n = pl.pallas_call(
        functools.partial(_lstm_layer_kernel, t_chunk=t_chunk, use_mask=use_mask),
        grid=(Bp // bt, T // t_chunk),
        in_specs=in_specs,
        out_specs=[
            pl.BlockSpec((t_chunk, bt, H), lambda bi, c: (c, bi, 0)),  # y chunk
            pl.BlockSpec((bt, H), lambda bi, c: (bi, 0)),              # h_n (resident)
            pl.BlockSpec((bt, H), lambda bi, c: (bi, 0)),              # c_n (resident)
        ],
        out_shape=[
            jax.ShapeDtypeStruct((T, Bp, H), jnp.float32),
            jax.ShapeDtypeStruct((Bp, H), jnp.float32),
            jax.ShapeDtypeStruct((Bp, H), jnp.float32),
        ],
        scratch_shapes=[
            pltpu.VMEM((H, G4), w_h.dtype),      # single-buffered recurrent weight
            pltpu.SemaphoreType.DMA,             # its DMA completion semaphore
        ],
        compiler_params=pltpu.CompilerParams(
            dimension_semantics=("parallel", "arbitrary"),
            vmem_limit_bytes=_vmem_limit()),
    )(*args)
    return y, h_n, c_n


# ----------------------------------------------------------------------------
# Wrappers (glue: embedding gather, padding, time-major transpose, layer loop).
# ----------------------------------------------------------------------------
def encoder_forward(kp, source, src_len):
    B, S = source.shape
    Bp = _round_up(B, SUBLANE)
    S_pad = _round_up(S, T_CHUNK)

    emb = kp["enc_emb"][source]                    # (B, S, E_PAD) gather (plain-JAX glue)
    emb = jnp.transpose(emb, (1, 0, 2))            # time-major (S, B, E_PAD)
    emb = jnp.pad(emb, ((0, S_pad - S), (0, Bp - B), (0, 0)))
    lens = jnp.zeros((Bp, 1), jnp.int32).at[:B, 0].set(src_len.astype(jnp.int32))

    h0 = jnp.zeros((Bp, H_PAD), jnp.float32)
    c0 = jnp.zeros((Bp, H_PAD), jnp.float32)

    # TODO(synk): on v5e/v6e (128 MiB VMEM) a 4-layer fused recurrent kernel with
    # bf16 weights would avoid the per-layer (T,B,H) HBM round-trip; kept
    # layer-major here since that is the only layout that fits v7x's 64 MiB/TC.
    x = emb
    h_list, c_list = [], []
    for l in range(NUM_LAYERS):        # layer-major: one layer's W_h resident at a time
        x, h_n, c_n = lstm_layer_forward(x, kp["enc_wx"][l], kp["enc_wh"][l],
                                         kp["enc_b"][l], h0, c0, lengths=lens)
        h_list.append(h_n)
        c_list.append(c_n)
    return jnp.stack(h_list), jnp.stack(c_list)    # (L, Bp, H_PAD), padded


def decoder_forward(kp, target, h_n, c_n):
    B, T = target.shape
    Bp = h_n.shape[1]
    T_pad = _round_up(T, T_CHUNK)
    V_pad = kp["fc_w"].shape[1]

    emb = kp["dec_emb"][target]                    # (B, T, E_PAD)
    emb = jnp.transpose(emb, (1, 0, 2))            # (T, B, E_PAD)
    emb = jnp.pad(emb, ((0, T_pad - T), (0, Bp - B), (0, 0)))

    x = emb
    for l in range(NUM_LAYERS):
        x, _, _ = lstm_layer_forward(x, kp["dec_wx"][l], kp["dec_wh"][l],
                                     kp["dec_b"][l], h_n[l], c_n[l], lengths=None)
    # Vocab projection over all timesteps at once: M/N-tiled, 2-D parallel grid.
    logits = matmul_bias(x.reshape(T_pad * Bp, H_PAD), kp["fc_w"], kp["fc_b"])
    return logits.reshape(T_pad, Bp, V_pad)        # padded; caller slices


def seq2seq_forward(kp, source, src_len, target, num_trg_words):
    B, T = target.shape
    h_n, c_n = encoder_forward(kp, source, src_len)
    out = decoder_forward(kp, target, h_n, c_n)
    return out[:T, :B, :num_trg_words]             # strip padding -> (T_trg, B, V)


# ----------------------------------------------------------------------------
# Parameter init (torch layout, uniform(-0.08, 0.08) like Seq2Seq._init_weights)
# and kernel-layout preparation (pad / split / transpose / optional bf16 cast).
# ----------------------------------------------------------------------------
def init_torch_params(key, num_src_words, num_trg_words):
    E, H, L = EMB_DIM, CELL_DIM, NUM_LAYERS
    keys = iter(jax.random.split(key, 64))
    u = lambda shape: jax.random.uniform(next(keys), shape, jnp.float32, -0.08, 0.08)
    p = {"enc_emb": u((num_src_words, E)), "dec_emb": u((num_trg_words, E))}
    for pre in ("enc", "dec"):
        p[f"{pre}_wih"] = [u((4 * H, E if l == 0 else H)) for l in range(L)]
        p[f"{pre}_whh"] = [u((4 * H, H)) for l in range(L)]
        p[f"{pre}_bih"] = [u((4 * H,)) for l in range(L)]
        p[f"{pre}_bhh"] = [u((4 * H,)) for l in range(L)]
    p["fc_w"] = u((num_trg_words, H))   # torch Linear layout (out, in)
    p["fc_b"] = u((num_trg_words,))
    return p


def prepare_kernel_params(p, num_trg_words, *, weight_dtype=jnp.float32):
    """Per-layer W_x (Din_pad, 4*H_PAD), W_h (H_PAD, 4*H_PAD) and combined bias
    (1, 4*H_PAD) with each torch gate block (i,f,g,o) at lane offset k*H_PAD;
    pad rows/lanes are zero so padded h/c columns stay exactly 0 (exact padding).
    At production dims pass weight_dtype=jnp.bfloat16 (mandatory on v7x: the
    f32 W_h alone is 32 MiB); h/c state and bias stay f32."""
    E, H, L = EMB_DIM, CELL_DIM, NUM_LAYERS

    def pad_gates_T(w, din, din_pad):              # w: (4H, din) torch layout
        out = jnp.zeros((din_pad, 4 * H_PAD), jnp.float32)
        for k in range(4):
            out = out.at[:din, k * H_PAD:k * H_PAD + H].set(w[k * H:(k + 1) * H, :].T)
        return out.astype(weight_dtype)

    def pad_bias(bih, bhh):
        b = bih + bhh
        out = jnp.zeros((1, 4 * H_PAD), jnp.float32)
        for k in range(4):
            out = out.at[0, k * H_PAD:k * H_PAD + H].set(b[k * H:(k + 1) * H])
        return out

    kp = {
        "enc_emb": jnp.pad(p["enc_emb"], ((0, 0), (0, E_PAD - E))),
        "dec_emb": jnp.pad(p["dec_emb"], ((0, 0), (0, E_PAD - E))),
    }
    for pre in ("enc", "dec"):
        wx, wh, bs = [], [], []
        for l in range(L):
            din, din_pad = (E, E_PAD) if l == 0 else (H, H_PAD)
            wx.append(pad_gates_T(p[f"{pre}_wih"][l], din, din_pad))
            wh.append(pad_gates_T(p[f"{pre}_whh"][l], H, H_PAD))
            bs.append(pad_bias(p[f"{pre}_bih"][l], p[f"{pre}_bhh"][l]))
        kp[f"{pre}_wx"], kp[f"{pre}_wh"], kp[f"{pre}_b"] = wx, wh, bs
    V = num_trg_words
    V_pad = _round_up(V, LANE)
    kp["fc_w"] = (jnp.zeros((H_PAD, V_pad), jnp.float32)
                  .at[:H, :V].set(p["fc_w"].T)).astype(weight_dtype)
    kp["fc_b"] = jnp.zeros((1, V_pad), jnp.float32).at[0, :V].set(p["fc_b"])
    return kp


# ----------------------------------------------------------------------------
# Pure-JAX reference at TRUE (unpadded) dims for correctness check.
# ----------------------------------------------------------------------------
def seq2seq_ref(p, source, src_len, target):
    E, H, L = EMB_DIM, CELL_DIM, NUM_LAYERS
    B = source.shape[0]

    def run_stack(emb_tbe, h0, c0, wih, whh, bih, bhh, lengths=None):
        T = emb_tbe.shape[0]
        h = [h0[l] for l in range(L)]
        c = [c0[l] for l in range(L)]
        outs = []
        for t in range(T):
            x = emb_tbe[t]
            mask = (t < lengths)[:, None] if lengths is not None else None
            for l in range(L):
                gates = x @ wih[l].T + h[l] @ whh[l].T + bih[l] + bhh[l]
                i = jax.nn.sigmoid(gates[:, :H])
                f = jax.nn.sigmoid(gates[:, H:2 * H])
                g = jnp.tanh(gates[:, 2 * H:3 * H])
                o = jax.nn.sigmoid(gates[:, 3 * H:])
                cn = f * c[l] + i * g
                hn = o * jnp.tanh(cn)
                if mask is not None:
                    cn = jnp.where(mask, cn, c[l])
                    hn = jnp.where(mask, hn, h[l])
                c[l], h[l] = cn, hn
                x = hn
            outs.append(x)
        return jnp.stack(outs), jnp.stack(h), jnp.stack(c)

    zeros = jnp.zeros((L, B, H), jnp.float32)
    emb_s = jnp.transpose(p["enc_emb"][source], (1, 0, 2))
    _, h_n, c_n = run_stack(emb_s, zeros, zeros, p["enc_wih"], p["enc_whh"],
                            p["enc_bih"], p["enc_bhh"],
                            lengths=src_len.astype(jnp.int32))
    emb_t = jnp.transpose(p["dec_emb"][target], (1, 0, 2))
    y, _, _ = run_stack(emb_t, h_n, c_n, p["dec_wih"], p["dec_whh"],
                        p["dec_bih"], p["dec_bhh"])
    return jnp.einsum("tbh,vh->tbv", y, p["fc_w"]) + p["fc_b"]


if __name__ == "__main__":
    # TODO(synk): the PyTorch reference calls pack_padded_sequence without
    # batch_first on a batch-first embedding (layout quirk in the original code);
    # here packing is emulated as per-timestep length masking on batch-first data.
    num_src_words, num_trg_words = 50, 60
    B, S_SRC, T_TRG = 2, 8, 6

    key = jax.random.PRNGKey(0)
    k_par, k_src, k_trg = jax.random.split(key, 3)
    params = init_torch_params(k_par, num_src_words, num_trg_words)
    kparams = prepare_kernel_params(params, num_trg_words)   # weight_dtype=bf16 at prod dims

    source = jax.random.randint(k_src, (B, S_SRC), 0, num_src_words, dtype=jnp.int32)
    src_len = jnp.array([8, 5], dtype=jnp.int32)   # sorted descending (pack semantics)
    target = jax.random.randint(k_trg, (B, T_TRG), 0, num_trg_words, dtype=jnp.int32)

    out = seq2seq_forward(kparams, source, src_len, target, num_trg_words)
    jax.block_until_ready(out)
    assert out.shape == (T_TRG, B, num_trg_words), out.shape

    ref = seq2seq_ref(params, source, src_len, target)
    np.testing.assert_allclose(np.asarray(out), np.asarray(ref), atol=1e-3, rtol=1e-3)

    print("KERNEL_OK")
</pallas_src>

<mosaic_0001>
module attributes {stable_mosaic.version = 11 : i64} {
  func.func @_matmul_bias_kernel(%arg0: i32, %arg1: i32, %arg2: memref<64x128xf32, #tpu.memory_space<vmem>>, %arg3: memref<128x512xf32, #tpu.memory_space<vmem>>, %arg4: memref<1x512xf32, #tpu.memory_space<vmem>>, %arg5: memref<64x512xf32, #tpu.memory_space<vmem>>) attributes {dimension_semantics = [#tpu.dimension_semantics<parallel>, #tpu.dimension_semantics<parallel>], iteration_bounds = array<i64: 1, 1>, scalar_prefetch = 0 : i64, scratch_operands = 0 : i64, tpu.core_type = #tpu.core_type<tc>, window_params = [{transform_indices = @transform_0, window_bounds = array<i64: 64, 128>}, {transform_indices = @transform_1, window_bounds = array<i64: 128, 512>}, {transform_indices = @transform_2, window_bounds = array<i64: 1, 512>}, {transform_indices = @transform_3, window_bounds = array<i64: 64, 512>}]} {
    %c0 = arith.constant 0 : index
    %c0_0 = arith.constant 0 : index
    %0 = vector.load %arg2[%c0, %c0_0] : memref<64x128xf32, #tpu.memory_space<vmem>>, vector<64x128xf32>
    %c0_1 = arith.constant 0 : index
    %c0_2 = arith.constant 0 : index
    %1 = vector.load %arg3[%c0_1, %c0_2] : memref<128x512xf32, #tpu.memory_space<vmem>>, vector<128x512xf32>
    %cst = arith.constant dense<0.000000e+00> : vector<64x512xf32>
    %2 = tpu.matmul %0, %1, %cst {dimension_numbers = #tpu.dot_dimension_numbers<[1], [0], [0], [1], [0, 0, 1, 1], [], []>} : vector<64x128xf32>, vector<128x512xf32>, vector<64x512xf32> -> vector<64x512xf32>
    %c0_3 = arith.constant 0 : index
    %c0_4 = arith.constant 0 : index
    %3 = vector.load %arg4[%c0_3, %c0_4] : memref<1x512xf32, #tpu.memory_space<vmem>>, vector<1x512xf32>
    %4 = vector.broadcast %3 : vector<1x512xf32> to vector<64x512xf32>
    %5 = arith.addf %2, %4 : vector<64x512xf32>
    %c0_5 = arith.constant 0 : index
    %c0_6 = arith.constant 0 : index
    %6 = vector.load %arg5[%c0_5, %c0_6] : memref<64x512xf32, #tpu.memory_space<vmem>>, vector<64x512xf32>
    tpu.vector_store %arg5[%c0_5, %c0_6], %5 {strides = array<i32>} : memref<64x512xf32, #tpu.memory_space<vmem>>, vector<64x512xf32>,
    return
  }
  func.func @transform_0(%arg0: i32, %arg1: i32) -> (i32, i32) {
    %c0_i32 = arith.constant 0 : i32
    %c0_i32_0 = arith.constant 0 : i32
    return %arg0, %c0_i32 : i32, i32
  }
  func.func @transform_1(%arg0: i32, %arg1: i32) -> (i32, i32) {
    %c0_i32 = arith.constant 0 : i32
    %c0_i32_0 = arith.constant 0 : i32
    return %c0_i32, %arg1 : i32, i32
  }
  func.func @transform_2(%arg0: i32, %arg1: i32) -> (i32, i32) {
    %c0_i32 = arith.constant 0 : i32
    %c0_i32_0 = arith.constant 0 : i32
    return %c0_i32, %arg1 : i32, i32
  }
  func.func @transform_3(%arg0: i32, %arg1: i32) -> (i32, i32) {
    %c0_i32 = arith.constant 0 : i32
    return %arg0, %arg1 : i32, i32
  }
}

</mosaic_0001>

<llo_original>
// kernel: tpu_custom_call.1
$region0: #{tpu_custom_call.1}
  #allocation0 [shape = 'u32[]', space=smem, size = 0x4, offset = 0x4, fixed_abs, tag = 'smem constant byte address 0x4 - core index']
  #allocation1 [shape = 'u32[144,128]{1,0:T(1,128)}', space=vmem, size = 0x12000, scoped, tag = 'internal scratch']
  %s0 = inlined_call_operand.hbm [shape: f32[64,128], index: 0, kind: input, shape index: {}]
  %s1 = inlined_call_operand.hbm [shape: f32[128,512], index: 1, kind: input, shape index: {}]
  %s2 = inlined_call_operand.hbm [shape: f32[1,512], index: 2, kind: input, shape index: {}]
  %s3 = inlined_call_operand.hbm [shape: f32[64,512], index: 3, kind: output, shape index: {}]
  %s4 = sld [smem:[#allocation0]]
  $region34: #{tpu_custom_call.1} parent=0
    _
  %s6 = ssub.s32 1, %s4
  %s7 = scalar_select 0, %s6, %s4
  $region1: #{tpu_custom_call.1} parent=0
    #allocation2 [shape = 'u8[32768]{0}', space=vmem, size = 0x8000, scoped, tag = 'input window, operand 0, single buffered']
    #allocation3 [shape = 's32[1]{0}', space=sflag, size = 0x4, scoped, tag = 'scoped memory for tpu_custom_call.1']
    #allocation4 [shape = 's32[1]{0}', space=sflag, size = 0x4, scoped, tag = 'scoped memory for tpu_custom_call.1']
    #allocation5 [shape = 'u8[262144]{0}', space=vmem, size = 0x40000, scoped, tag = 'input window, operand 1, single buffered']
    #allocation6 [shape = 's32[1]{0}', space=sflag, size = 0x4, scoped, tag = 'scoped memory for tpu_custom_call.1']
    #allocation7 [shape = 'u8[2048]{0}', space=vmem, size = 0x800, scoped, tag = 'input window, operand 2, single buffered']
    #allocation8 [shape = 'u8[131072]{0}', space=vmem, size = 0x20000, scoped, tag = 'output window, operand 0, single buffered']
    %8 = vsyncpa [#allocation3], 0
    %9 = vsyncpa [#allocation6], 0
    %10 = vsyncpa [#allocation4], 0
    // Predicated region
    $region2: #{tpu_custom_call.1} parent=1 // pred_check
      _
    $region3: #{tpu_custom_call.1} parent=1 // pred_check_branch
      %12 = sbr.rel (0) target = $region5
    $region4: #{tpu_custom_call.1} parent=1 // pred_region
      %s14 = ssub.s32 1024, 1024
      %15 = vsyncadd [#allocation3], %s14
      %s16 = sshll.u32 [#allocation2], 4
      %s17 = int_to_ptr.vmem [resolvable:$true] %s16
      %22 = dma.hbm_to_vmem [thread:$0]  %s0, 1024, %s17, [#allocation3], 128, 128, 8
    $region5: #{tpu_custom_call.1} parent=1 // pred_fallthru
      _
    // Predicated region
    $region6: #{tpu_custom_call.1} parent=1 // pred_check
      _
    $region7: #{tpu_custom_call.1} parent=1 // pred_check_branch
      %24 = sbr.rel (0) target = $region9
    $region8: #{tpu_custom_call.1} parent=1 // pred_region
      %s26 = ssub.s32 8192, 8192
      %27 = vsyncadd [#allocation6], %s26
      %s28 = sshll.u32 [#allocation5], 4
      %s29 = int_to_ptr.vmem [resolvable:$true] %s28
      %34 = dma.hbm_to_vmem [thread:$0]  %s1, 8192, %s29, [#allocation6], 512, 512, 32
    $region9: #{tpu_custom_call.1} parent=1 // pred_fallthru
      _
    // Predicated region
    $region10: #{tpu_custom_call.1} parent=1 // pred_check
      _
    $region11: #{tpu_custom_call.1} parent=1 // pred_check_branch
      %36 = sbr.rel (0) target = $region13
    $region12: #{tpu_custom_call.1} parent=1 // pred_region
      %s38 = ssub.s32 64, 64
      %39 = vsyncadd [#allocation6], %s38
      %s41 = sshll.u32 [#allocation7], 4
      %s42 = int_to_ptr.vmem [resolvable:$true] %s41
      %44 = dma.hbm_to_vmem [thread:$0]  %s2, 64, %s42, [#allocation6]
    $region13: #{tpu_custom_call.1} parent=1 // pred_fallthru
      _
    // Predicated region
    $region14: #{tpu_custom_call.1} parent=1 // pred_check
      _
    $region15: #{tpu_custom_call.1} parent=1 // pred_check_branch
      %46 = sbr.rel (0) target = $region17
    $region16: #{tpu_custom_call.1} parent=1 // pred_region
      %47 = dma.done [#allocation3], 1024
    $region17: #{tpu_custom_call.1} parent=1 // pred_fallthru
      _
    // Predicated region
    $region18: #{tpu_custom_call.1} parent=1 // pred_check
      _
    $region19: #{tpu_custom_call.1} parent=1 // pred_check_branch
      %49 = sbr.rel (0) target = $region21
    $region20: #{tpu_custom_call.1} parent=1 // pred_region
      %50 = dma.done [#allocation6], 8192
    $region21: #{tpu_custom_call.1} parent=1 // pred_fallthru
      _
    // Predicated region
    $region22: #{tpu_custom_call.1} parent=1 // pred_check
      _
    $region23: #{tpu_custom_call.1} parent=1 // pred_check_branch
      %52 = sbr.rel (0) target = $region25
    $region24: #{tpu_custom_call.1} parent=1 // pred_region
      %53 = dma.done [#allocation6], 64
    $region25: #{tpu_custom_call.1} parent=1 // pred_fallthru
      _
    %v54 = vld [vmem:[#allocation2] sm:$0xff]
    %v55 = vld [vmem:[#allocation2 + $0x8] sm:$0xff]
    %v56 = vld [vmem:[#allocation2 + $0x10] sm:$0xff]
    %v57 = vld [vmem:[#allocation2 + $0x18] sm:$0xff]
    %v58 = vld [vmem:[#allocation2 + $0x20] sm:$0xff]
    %v59 = vld [vmem:[#allocation2 + $0x28] sm:$0xff]
    %v60 = vld [vmem:[#allocation2 + $0x30] sm:$0xff]
    %v61 = vld [vmem:[#allocation2 + $0x38] sm:$0xff]
    %v62 = vld [vmem:[#allocation5] sm:$0xff]
    %v63 = vld [vmem:[#allocation5 + $0x8] sm:$0xff]
    %v64 = vld [vmem:[#allocation5 + $0x10] sm:$0xff]
    %v65 = vld [vmem:[#allocation5 + $0x18] sm:$0xff]
    %v66 = vld [vmem:[#allocation5 + $0x20] sm:$0xff]
    %v67 = vld [vmem:[#allocation5 + $0x28] sm:$0xff]
    %v68 = vld [vmem:[#allocation5 + $0x30] sm:$0xff]
    %v69 = vld [vmem:[#allocation5 + $0x38] sm:$0xff]
    %v70 = vld [vmem:[#allocation5 + $0x40] sm:$0xff]
    %v71 = vld [vmem:[#allocation5 + $0x48] sm:$0xff]
    %v72 = vld [vmem:[#allocation5 + $0x50] sm:$0xff]
    %v73 = vld [vmem:[#allocation5 + $0x58] sm:$0xff]
    %v74 = vld [vmem:[#allocation5 + $0x60] sm:$0xff]
    %v75 = vld [vmem:[#allocation5 + $0x68] sm:$0xff]
    %v76 = vld [vmem:[#allocation5 + $0x70] sm:$0xff]
    %v77 = vld [vmem:[#allocation5 + $0x78] sm:$0xff]
    %v78 = vld [vmem:[#allocation5 + $0x80] sm:$0xff]
    %v79 = vld [vmem:[#allocation5 + $0x88] sm:$0xff]
    %v80 = vld [vmem:[#allocation5 + $0x90] sm:$0xff]
    %v81 = vld [vmem:[#allocation5 + $0x98] sm:$0xff]
    %v82 = vld [vmem:[#allocation5 + $0xa0] sm:$0xff]
    %v83 = vld [vmem:[#allocation5 + $0xa8] sm:$0xff]
    %v84 = vld [vmem:[#allocation5 + $0xb0] sm:$0xff]
    %v85 = vld [vmem:[#allocation5 + $0xb8] sm:$0xff]
    %v86 = vld [vmem:[#allocation5 + $0xc0] sm:$0xff]
    %v87 = vld [vmem:[#allocation5 + $0xc8] sm:$0xff]
    %v88 = vld [vmem:[#allocation5 + $0xd0] sm:$0xff]
    %v89 = vld [vmem:[#allocation5 + $0xd8] sm:$0xff]
    %v90 = vld [vmem:[#allocation5 + $0xe0] sm:$0xff]
    %v91 = vld [vmem:[#allocation5 + $0xe8] sm:$0xff]
    %v92 = vld [vmem:[#allocation5 + $0xf0] sm:$0xff]
    %v93 = vld [vmem:[#allocation5 + $0xf8] sm:$0xff]
    %v94 = vld [vmem:[#allocation5 + $0x100] sm:$0xff]
    %v95 = vld [vmem:[#allocation5 + $0x108] sm:$0xff]
    %v96 = vld [vmem:[#allocation5 + $0x110] sm:$0xff]
    %v97 = vld [vmem:[#allocation5 + $0x118] sm:$0xff]
    %v98 = vld [vmem:[#allocation5 + $0x120] sm:$0xff]
    %v99 = vld [vmem:[#allocation5 + $0x128] sm:$0xff]
    %v100 = vld [vmem:[#allocation5 + $0x130] sm:$0xff]
    %v101 = vld [vmem:[#allocation5 + $0x138] sm:$0xff]
    %v102 = vld [vmem:[#allocation5 + $0x140] sm:$0xff]
    %v103 = vld [vmem:[#allocation5 + $0x148] sm:$0xff]
    %v104 = vld [vmem:[#allocation5 + $0x150] sm:$0xff]
    %v105 = vld [vmem:[#allocation5 + $0x158] sm:$0xff]
    %v106 = vld [vmem:[#allocation5 + $0x160] sm:$0xff]
    %v107 = vld [vmem:[#allocation5 + $0x168] sm:$0xff]
    %v108 = vld [vmem:[#allocation5 + $0x170] sm:$0xff]
    %v109 = vld [vmem:[#allocation5 + $0x178] sm:$0xff]
    %v110 = vld [vmem:[#allocation5 + $0x180] sm:$0xff]
    %v111 = vld [vmem:[#allocation5 + $0x188] sm:$0xff]
    %v112 = vld [vmem:[#allocation5 + $0x190] sm:$0xff]
    %v113 = vld [vmem:[#allocation5 + $0x198] sm:$0xff]
    %v114 = vld [vmem:[#allocation5 + $0x1a0] sm:$0xff]
    %v115 = vld [vmem:[#allocation5 + $0x1a8] sm:$0xff]
    %v116 = vld [vmem:[#allocation5 + $0x1b0] sm:$0xff]
    %v117 = vld [vmem:[#allocation5 + $0x1b8] sm:$0xff]
    %v118 = vld [vmem:[#allocation5 + $0x1c0] sm:$0xff]
    %v119 = vld [vmem:[#allocation5 + $0x1c8] sm:$0xff]
    %v120 = vld [vmem:[#allocation5 + $0x1d0] sm:$0xff]
    %v121 = vld [vmem:[#allocation5 + $0x1d8] sm:$0xff]
    %v122 = vld [vmem:[#allocation5 + $0x1e0] sm:$0xff]
    %v123 = vld [vmem:[#allocation5 + $0x1e8] sm:$0xff]
    %v124 = vld [vmem:[#allocation5 + $0x1f0] sm:$0xff]
    %v125 = vld [vmem:[#allocation5 + $0x1f8] sm:$0xff]
    %v126 = vld [vmem:[#allocation7] sm:$0xf]
    %v128 = vlaneseq
    %v129 = vshrl.u32 %v128, 7
    %v130 = vsub.s32 0, %v129
    %v131 = vrot.slane %v126, %v130
    %v132 = vlaneseq
    %v133 = vshrl.u32 %v132, 7
    %v134 = vsub.s32 1, %v133
    %v135 = vrot.slane %v126, %v134
    %v136 = vlaneseq
    %v137 = vshrl.u32 %v136, 7
    %v138 = vsub.s32 2, %v137
    %v139 = vrot.slane %v126, %v138
    %v140 = vlaneseq
    %v141 = vshrl.u32 %v140, 7
    %v142 = vsub.s32 3, %v141
    %v143 = vrot.slane %v126, %v142
    %148 = vmatprep.subr.mxu0 %v63
    %149 = vmatpush1.msra.mxu0 %v62
    %150 = vmatprep.subr.mxu0 %v67
    %151 = vmatpush1.msra.mxu0 %v66
    %152 = vmatprep.subr.mxu0 %v71
    %153 = vmatpush1.msra.mxu0 %v70
    %154 = vmatprep.subr.mxu0 %v75
    %155 = vmatpush1.msra.mxu0 %v74
    %156 = vmatprep.subr.mxu0 %v79
    %157 = vmatpush1.msra.mxu0 %v78
    %158 = vmatprep.subr.mxu0 %v83
    %159 = vmatpush1.msra.mxu0 %v82
    %160 = vmatprep.subr.mxu0 %v87
    %161 = vmatpush1.msra.mxu0 %v86
    %162 = vmatprep.subr.mxu0 %v91
    %163 = vmatpush1.msra.mxu0 %v90
    %164 = vmatprep.subr.mxu0 %v95
    %165 = vmatpush1.msra.mxu0 %v94
    %166 = vmatprep.subr.mxu0 %v99
    %167 = vmatpush1.msra.mxu0 %v98
    %168 = vmatprep.subr.mxu0 %v103
    %169 = vmatpush1.msra.mxu0 %v102
    %170 = vmatprep.subr.mxu0 %v107
    %171 = vmatpush1.msra.mxu0 %v106
    %172 = vmatprep.subr.mxu0 %v111
    %173 = vmatpush1.msra.mxu0 %v110
    %174 = vmatprep.subr.mxu0 %v115
    %175 = vmatpush1.msra.mxu0 %v114
    %176 = vmatprep.subr.mxu0 %v119
    %177 = vmatpush1.msra.mxu0 %v118
    %178 = vmatprep.subr.mxu0 %v123
    %179 = vmatpush1.msra.mxu0 %v122
    %180 = vmatprep.subr.mxu0 0.0
    %181 = vmatpush1.msra.mxu0 0.0
    %182 = vmatprep.subr.mxu0 0.0
    %183 = vmatpush1.msra.mxu0 0.0
    %184 = vmatprep.subr.mxu0 0.0
    %185 = vmatpush1.msra.mxu0 0.0
    %186 = vmatprep.subr.mxu0 0.0
    %187 = vmatpush1.msra.mxu0 0.0
    %188 = vmatprep.subr.mxu0 0.0
    %189 = vmatpush1.msra.mxu0 0.0
    %190 = vmatprep.subr.mxu0 0.0
    %191 = vmatpush1.msra.mxu0 0.0
    %192 = vmatprep.subr.mxu0 0.0
    %193 = vmatpush1.msra.mxu0 0.0
    %194 = vmatprep.subr.mxu0 0.0
    %195 = vmatpush1.msra.mxu0 0.0
    %196 = vmatprep.subr.mxu0 0.0
    %197 = vmatpush1.msra.mxu0 0.0
    %198 = vmatprep.subr.mxu0 0.0
    %199 = vmatpush1.msra.mxu0 0.0
    %200 = vmatprep.subr.mxu0 0.0
    %201 = vmatpush1.msra.mxu0 0.0
    %202 = vmatprep.subr.mxu0 0.0
    %203 = vmatpush1.msra.mxu0 0.0
    %204 = vmatprep.subr.mxu0 0.0
    %205 = vmatpush1.msra.mxu0 0.0
    %206 = vmatprep.subr.mxu0 0.0
    %207 = vmatpush1.msra.mxu0 0.0
    %208 = vmatprep.subr.mxu0 0.0
    %209 = vmatpush1.msra.mxu0 0.0
    %210 = vmatprep.subr.mxu0 0.0
    %211 = vmatpush1.msra.mxu0 0.0
    %212 = vmatprep.mubr.f32.mxu0 0.0
    %213 = vmatmul.mubr.f32.gmra.mrb[0].mxu0 %v54
    %v214 = vpop.f32.mrb[0].mxu0
    %v215 = vadd.f32 %v131, %v214
    %v216 = vpop.f32.mrb[0].mxu0
    %v217 = vadd.f32 %v135, %v216
    %218 = vmatprep.mubr.f32.mxu0 0.0
    %219 = vmatmul.mubr.f32.gmra.mrb[0].mxu0 %v55
    %v220 = vpop.f32.mrb[0].mxu0
    %v221 = vadd.f32 %v131, %v220
    %v222 = vpop.f32.mrb[0].mxu0
    %v223 = vadd.f32 %v135, %v222
    %224 = vmatprep.mubr.f32.mxu0 0.0
    %225 = vmatmul.mubr.f32.gmra.mrb[0].mxu0 %v56
    %v226 = vpop.f32.mrb[0].mxu0
    %v227 = vadd.f32 %v131, %v226
    %v228 = vpop.f32.mrb[0].mxu0
    %v229 = vadd.f32 %v135, %v228
    %230 = vmatprep.mubr.f32.mxu0 0.0
    %231 = vmatmul.mubr.f32.gmra.mrb[0].mxu0 %v57
    %v232 = vpop.f32.mrb[0].mxu0
    %v233 = vadd.f32 %v131, %v232
    %v234 = vpop.f32.mrb[0].mxu0
    %v235 = vadd.f32 %v135, %v234
    %236 = vmatprep.mubr.f32.mxu0 0.0
    %237 = vmatmul.mubr.f32.gmra.mrb[0].mxu0 %v58
    %v238 = vpop.f32.mrb[0].mxu0
    %v239 = vadd.f32 %v131, %v238
    %v240 = vpop.f32.mrb[0].mxu0
    %v241 = vadd.f32 %v135, %v240
    %242 = vmatprep.mubr.f32.mxu0 0.0
    %243 = vmatmul.mubr.f32.gmra.mrb[0].mxu0 %v59
    %v244 = vpop.f32.mrb[0].mxu0
    %v245 = vadd.f32 %v131, %v244
    %v246 = vpop.f32.mrb[0].mxu0
    %v247 = vadd.f32 %v135, %v246
    %248 = vmatprep.mubr.f32.mxu0 0.0
    %249 = vmatmul.mubr.f32.gmra.mrb[0].mxu0 %v60
    %v250 = vpop.f32.mrb[0].mxu0
    %v251 = vadd.f32 %v131, %v250
    %v252 = vpop.f32.mrb[0].mxu0
    %v253 = vadd.f32 %v135, %v252
    %254 = vmatprep.mubr.f32.mxu0 0.0
    %255 = vmatmul.mubr.f32.gmra.mrb[0].mxu0 %v61
    %v256 = vpop.f32.mrb[0].mxu0
    %v257 = vadd.f32 %v131, %v256
    %v258 = vpop.f32.mrb[0].mxu0
    %v259 = vadd.f32 %v135, %v258
    %260 = vdwg.mxu0
    %261 = vmatprep.subr.mxu0 %v65
    %262 = vmatpush1.msra.mxu0 %v64
    %263 = vmatprep.subr.mxu0 %v69
    %264 = vmatpush1.msra.mxu0 %v68
    %265 = vmatprep.subr.mxu0 %v73
    %266 = vmatpush1.msra.mxu0 %v72
    %267 = vmatprep.subr.mxu0 %v77
    %268 = vmatpush1.msra.mxu0 %v76
    %269 = vmatprep.subr.mxu0 %v81
    %270 = vmatpush1.msra.mxu0 %v80
    %271 = vmatprep.subr.mxu0 %v85
    %272 = vmatpush1.msra.mxu0 %v84
    %273 = vmatprep.subr.mxu0 %v89
    %274 = vmatpush1.msra.mxu0 %v88
    %275 = vmatprep.subr.mxu0 %v93
    %276 = vmatpush1.msra.mxu0 %v92
    %277 = vmatprep.subr.mxu0 %v97
    %278 = vmatpush1.msra.mxu0 %v96
    %279 = vmatprep.subr.mxu0 %v101
    %280 = vmatpush1.msra.mxu0 %v100
    %281 = vmatprep.subr.mxu0 %v105
    %282 = vmatpush1.msra.mxu0 %v104
    %283 = vmatprep.subr.mxu0 %v109
    %284 = vmatpush1.msra.mxu0 %v108
    %285 = vmatprep.subr.mxu0 %v113
    %286 = vmatpush1.msra.mxu0 %v112
    %287 = vmatprep.subr.mxu0 %v117
    %288 = vmatpush1.msra.mxu0 %v116
    %289 = vmatprep.subr.mxu0 %v121
    %290 = vmatpush1.msra.mxu0 %v120
    %291 = vmatprep.subr.mxu0 %v125
    %292 = vmatpush1.msra.mxu0 %v124
    %293 = vmatprep.subr.mxu0 0.0
    %294 = vmatpush1.msra.mxu0 0.0
    %295 = vmatprep.subr.mxu0 0.0
    %296 = vmatpush1.msra.mxu0 0.0
    %297 = vmatprep.subr.mxu0 0.0
    %298 = vmatpush1.msra.mxu0 0.0
    %299 = vmatprep.subr.mxu0 0.0
    %300 = vmatpush1.msra.mxu0 0.0
    %301 = vmatprep.subr.mxu0 0.0
    %302 = vmatpush1.msra.mxu0 0.0
    %303 = vmatprep.subr.mxu0 0.0
    %304 = vmatpush1.msra.mxu0 0.0
    %305 = vmatprep.subr.mxu0 0.0
    %306 = vmatpush1.msra.mxu0 0.0
    %307 = vmatprep.subr.mxu0 0.0
    %308 = vmatpush1.msra.mxu0 0.0
    %309 = vmatprep.subr.mxu0 0.0
    %310 = vmatpush1.msra.mxu0 0.0
    %311 = vmatprep.subr.mxu0 0.0
    %312 = vmatpush1.msra.mxu0 0.0
    %313 = vmatprep.subr.mxu0 0.0
    %314 = vmatpush1.msra.mxu0 0.0
    %315 = vmatprep.subr.mxu0 0.0
    %316 = vmatpush1.msra.mxu0 0.0
    %317 = vmatprep.subr.mxu0 0.0
    %318 = vmatpush1.msra.mxu0 0.0
    %319 = vmatprep.subr.mxu0 0.0
    %320 = vmatpush1.msra.mxu0 0.0
    %321 = vmatprep.subr.mxu0 0.0
    %322 = vmatpush1.msra.mxu0 0.0
    %323 = vmatprep.subr.mxu0 0.0
    %324 = vmatpush1.msra.mxu0 0.0
    %325 = vmatprep.mubr.f32.mxu0 0.0
    %326 = vmatmul.mubr.f32.gmra.mrb[0].mxu0 %v54
    %v327 = vpop.f32.mrb[0].mxu0
    %v328 = vadd.f32 %v139, %v327
    %v329 = vpop.f32.mrb[0].mxu0
    %v330 = vadd.f32 %v143, %v329
    %331 = vmatprep.mubr.f32.mxu0 0.0
    %332 = vmatmul.mubr.f32.gmra.mrb[0].mxu0 %v55
    %v333 = vpop.f32.mrb[0].mxu0
    %v334 = vadd.f32 %v139, %v333
    %v335 = vpop.f32.mrb[0].mxu0
    %v336 = vadd.f32 %v143, %v335
    %337 = vmatprep.mubr.f32.mxu0 0.0
    %338 = vmatmul.mubr.f32.gmra.mrb[0].mxu0 %v56
    %v339 = vpop.f32.mrb[0].mxu0
    %v340 = vadd.f32 %v139, %v339
    %v341 = vpop.f32.mrb[0].mxu0
    %v342 = vadd.f32 %v143, %v341
    %343 = vmatprep.mubr.f32.mxu0 0.0
    %344 = vmatmul.mubr.f32.gmra.mrb[0].mxu0 %v57
    %v345 = vpop.f32.mrb[0].mxu0
    %v346 = vadd.f32 %v139, %v345
    %v347 = vpop.f32.mrb[0].mxu0
    %v348 = vadd.f32 %v143, %v347
    %349 = vmatprep.mubr.f32.mxu0 0.0
    %350 = vmatmul.mubr.f32.gmra.mrb[0].mxu0 %v58
    %v351 = vpop.f32.mrb[0].mxu0
    %v352 = vadd.f32 %v139, %v351
    %v353 = vpop.f32.mrb[0].mxu0
    %v354 = vadd.f32 %v143, %v353
    %355 = vmatprep.mubr.f32.mxu0 0.0
    %356 = vmatmul.mubr.f32.gmra.mrb[0].mxu0 %v59
    %v357 = vpop.f32.mrb[0].mxu0
    %v358 = vadd.f32 %v139, %v357
    %v359 = vpop.f32.mrb[0].mxu0
    %v360 = vadd.f32 %v143, %v359
    %361 = vmatprep.mubr.f32.mxu0 0.0
    %362 = vmatmul.mubr.f32.gmra.mrb[0].mxu0 %v60
    %v363 = vpop.f32.mrb[0].mxu0
    %v364 = vadd.f32 %v139, %v363
    %v365 = vpop.f32.mrb[0].mxu0
    %v366 = vadd.f32 %v143, %v365
    %367 = vmatprep.mubr.f32.mxu0 0.0
    %368 = vmatmul.mubr.f32.gmra.mrb[0].mxu0 %v61
    %v369 = vpop.f32.mrb[0].mxu0
    %v370 = vadd.f32 %v139, %v369
    %v371 = vpop.f32.mrb[0].mxu0
    %v372 = vadd.f32 %v143, %v371
    %373 = vdwg.mxu0
    %374 = vst [vmem:[#allocation8] sm:$0xff] %v215
    %375 = vst [vmem:[#allocation8 + $0x8] sm:$0xff] %v217
    %376 = vst [vmem:[#allocation8 + $0x10] sm:$0xff] %v328
    %377 = vst [vmem:[#allocation8 + $0x18] sm:$0xff] %v330
    %378 = vst [vmem:[#allocation8 + $0x20] sm:$0xff] %v221
    %379 = vst [vmem:[#allocation8 + $0x28] sm:$0xff] %v223
    %380 = vst [vmem:[#allocation8 + $0x30] sm:$0xff] %v334
    %381 = vst [vmem:[#allocation8 + $0x38] sm:$0xff] %v336
    %382 = vst [vmem:[#allocation8 + $0x40] sm:$0xff] %v227
    %383 = vst [vmem:[#allocation8 + $0x48] sm:$0xff] %v229
    %384 = vst [vmem:[#allocation8 + $0x50] sm:$0xff] %v340
    %385 = vst [vmem:[#allocation8 + $0x58] sm:$0xff] %v342
    %386 = vst [vmem:[#allocation8 + $0x60] sm:$0xff] %v233
    %387 = vst [vmem:[#allocation8 + $0x68] sm:$0xff] %v235
    %388 = vst [vmem:[#allocation8 + $0x70] sm:$0xff] %v346
    %389 = vst [vmem:[#allocation8 + $0x78] sm:$0xff] %v348
    %390 = vst [vmem:[#allocation8 + $0x80] sm:$0xff] %v239
    %391 = vst [vmem:[#allocation8 + $0x88] sm:$0xff] %v241
    %392 = vst [vmem:[#allocation8 + $0x90] sm:$0xff] %v352
    %393 = vst [vmem:[#allocation8 + $0x98] sm:$0xff] %v354
    %394 = vst [vmem:[#allocation8 + $0xa0] sm:$0xff] %v245
    %395 = vst [vmem:[#allocation8 + $0xa8] sm:$0xff] %v247
    %396 = vst [vmem:[#allocation8 + $0xb0] sm:$0xff] %v358
    %397 = vst [vmem:[#allocation8 + $0xb8] sm:$0xff] %v360
    %398 = vst [vmem:[#allocation8 + $0xc0] sm:$0xff] %v251
    %399 = vst [vmem:[#allocation8 + $0xc8] sm:$0xff] %v253
    %400 = vst [vmem:[#allocation8 + $0xd0] sm:$0xff] %v364
    %401 = vst [vmem:[#allocation8 + $0xd8] sm:$0xff] %v366
    %402 = vst [vmem:[#allocation8 + $0xe0] sm:$0xff] %v257
    %403 = vst [vmem:[#allocation8 + $0xe8] sm:$0xff] %v259
    %404 = vst [vmem:[#allocation8 + $0xf0] sm:$0xff] %v370
    %405 = vst [vmem:[#allocation8 + $0xf8] sm:$0xff] %v372
    // Predicated region
    $region26: #{tpu_custom_call.1} parent=1 // pred_check
      _
    $region27: #{tpu_custom_call.1} parent=1 // pred_check_branch
      %407 = sbr.rel (0) target = $region29
    $region28: #{tpu_custom_call.1} parent=1 // pred_region
      %s409 = ssub.s32 4096, 4096
      %410 = vsyncadd [#allocation4], %s409
      %s411 = sshll.u32 [#allocation8], 4
      %s412 = int_to_ptr.vmem [resolvable:$true] %s411
      %417 = dma.vmem_to_hbm [thread:$0]  %s412, 4096, %s3, [#allocation4], 512, 512, 32
    $region29: #{tpu_custom_call.1} parent=1 // pred_fallthru
      _
    // Predicated region
    $region30: #{tpu_custom_call.1} parent=1 // pred_check
      _
    $region31: #{tpu_custom_call.1} parent=1 // pred_check_branch
      %419 = sbr.rel (0) target = $region33
    $region32: #{tpu_custom_call.1} parent=1 // pred_region
      %420 = dma.done [#allocation4], 4096
    $region33: #{tpu_custom_call.1} parent=1 // pred_fallthru
      _
    %421 = vsyncpa [#allocation3], 1
    %422 = vsyncpa [#allocation6], 1
    %423 = vsyncpa [#allocation4], 1

</llo_original>
